<compile_context>
chip_gen: v6e
topology: v6e:2x2x1
jax: 0.10.0
libtpu: 0.0.40
codegen_flags: <defaults>
</compile_context>

<pallas_src>
import functools

import jax
import jax.numpy as jnp
from jax.experimental import pallas as pl
from jax.experimental.pallas import tpu as pltpu

# Problem sizes implied by the Iris module.
NUM_FEATURES = 4
NUM_CLASSES = 3
HIDDEN_FEATURES = 32

# Padded (TPU tile-aligned) sizes.
PAD_H = 128        # hidden dim (lane multiple); column HIDDEN_FEATURES is the constant-1 column
PAD_C = 128        # class dim used for the in-kernel logits / softmax reductions
PAD_C_OUT = 8      # narrow output slab actually written back to HBM
TB_MAX = 2048      # max rows per batch tile
SMALL_B = 256      # below this, use a single tile; above, split so v7x gets >=2 grid steps

NEG_BIG = -1e30    # pre-baked class mask value (folded into w2's constant-1 row)


def _round_up(n: int, m: int) -> int:
    return (n + m - 1) // m * m


def _mlp_softmax_kernel(x_ref, w1_ref, b1_ref, w2_ref, o_ref):
    # Layer 1: (TB, 4) @ (4, PAD_H) + b1, then ReLU.
    # b1 also plants a constant 1.0 in hidden column HIDDEN_FEATURES (its w1
    # column is zero), which carries b2 through the second matmul.
    h = jnp.dot(x_ref[...], w1_ref[...], preferred_element_type=jnp.float32)
    h = jnp.maximum(h + b1_ref[...], 0.0)

    # Layer 2: (TB, PAD_H) @ (PAD_H, PAD_C).  Row HIDDEN_FEATURES of w2 holds
    # b2 for real classes and -1e30 for padded class columns, so after the
    # max-subtraction the padded lanes' exp underflows to exactly 0.
    logits = jnp.dot(h, w2_ref[...], preferred_element_type=jnp.float32)

    # Softmax over the class axis (dim=1); reductions over the full 128 lanes.
    m = jnp.max(logits, axis=1, keepdims=True)
    e = jnp.exp(logits - m)
    s = jnp.sum(e, axis=1, keepdims=True)
    probs = e * pl.reciprocal(s, approx=False)

    # Narrow store: only the first PAD_C_OUT lanes go back to HBM.
    o_ref[...] = probs[:, :PAD_C_OUT]


def prepare_params(w1, b1, w2, b2):
    """Pad/fold parameters to TPU tile-aligned shapes. Call ONCE (not per forward).

    w1: (NUM_FEATURES, HIDDEN), b1: (HIDDEN,), w2: (HIDDEN, NUM_CLASSES),
    b2: (NUM_CLASSES,) -- all stored as (in, out) so the kernel does x @ W + b.
    """
    # Layer 1: no feature padding; hidden padded to 128 lanes.
    w1_p = jnp.zeros((NUM_FEATURES, PAD_H), jnp.float32)
    w1_p = w1_p.at[:, :HIDDEN_FEATURES].set(w1)
    b1_p = jnp.zeros((1, PAD_H), jnp.float32)
    b1_p = b1_p.at[0, :HIDDEN_FEATURES].set(b1)
    # Constant-1 hidden column (survives ReLU since its pre-activation is 1.0).
    b1_p = b1_p.at[0, HIDDEN_FEATURES].set(1.0)

    # Layer 2: fold b2 (and the -1e30 padded-class mask) into the constant-1 row.
    w2_p = jnp.zeros((PAD_H, PAD_C), jnp.float32)
    w2_p = w2_p.at[:HIDDEN_FEATURES, :NUM_CLASSES].set(w2)
    w2_p = w2_p.at[HIDDEN_FEATURES, :NUM_CLASSES].set(b2)
    w2_p = w2_p.at[HIDDEN_FEATURES, NUM_CLASSES:].set(NEG_BIG)
    return w1_p, b1_p, w2_p


@functools.partial(jax.jit, static_argnames=())
def iris_model_forward(x, w1_p, b1_p, w2_p):
    """Pallas forward.

    x: (B, NUM_FEATURES) f32 (unpadded).
    w1_p/b1_p/w2_p: pre-padded params from `prepare_params`.
    Returns (B, NUM_CLASSES) f32 softmax probabilities.
    """
    B = x.shape[0]

    # Batch tiling. Tiny batches -> single tile; moderate/large batches -> at
    # least 2 tiles so dimension_semantics=("parallel",) can shard across the
    # two TensorCores on v7x; tile size capped at TB_MAX.
    b_pad8 = _round_up(B, 8)
    if b_pad8 <= SMALL_B:
        tb = b_pad8
    else:
        tb = min(TB_MAX, _round_up(pl.cdiv(b_pad8, 2), 8))
    b_pad = _round_up(b_pad8, tb)
    n_tiles = b_pad // tb

    # Only the batch dim of x may need padding (fuses inside this jit).
    if b_pad != B:
        x_in = jnp.pad(x, ((0, b_pad - B), (0, 0)))
    else:
        x_in = x

    cost = pl.CostEstimate(
        flops=2 * b_pad * (NUM_FEATURES * PAD_H + PAD_H * PAD_C),
        transcendentals=b_pad * PAD_C,
        bytes_accessed=4 * (b_pad * NUM_FEATURES            # x read
                            + NUM_FEATURES * PAD_H + PAD_H  # w1, b1
                            + PAD_H * PAD_C                  # w2
                            + b_pad * PAD_C_OUT),            # narrow output
    )

    out_p = pl.pallas_call(
        _mlp_softmax_kernel,
        out_shape=jax.ShapeDtypeStruct((b_pad, PAD_C_OUT), jnp.float32),
        grid=(n_tiles,),
        in_specs=[
            pl.BlockSpec((tb, NUM_FEATURES), lambda i: (i, 0)),   # x tile streams
            pl.BlockSpec((NUM_FEATURES, PAD_H), lambda i: (0, 0)),  # weights stay resident
            pl.BlockSpec((1, PAD_H), lambda i: (0, 0)),
            pl.BlockSpec((PAD_H, PAD_C), lambda i: (0, 0)),
        ],
        out_specs=pl.BlockSpec((tb, PAD_C_OUT), lambda i: (i, 0)),
        compiler_params=pltpu.CompilerParams(
            dimension_semantics=("parallel",),  # batch tiles shard across v7x's 2 TCs
        ),
        cost_estimate=cost,
    )(x_in, w1_p, b1_p, w2_p)

    return out_p[:B, :NUM_CLASSES]


def _init_params(key):
    """Deterministic init mimicking torch.nn.Linear's uniform(-1/sqrt(fan_in), ...)."""
    k1, k2, k3, k4 = jax.random.split(key, 4)
    bound1 = 1.0 / jnp.sqrt(jnp.float32(NUM_FEATURES))
    bound2 = 1.0 / jnp.sqrt(jnp.float32(HIDDEN_FEATURES))
    # Stored as (in_features, out_features) so the kernel does x @ W + b,
    # equivalent to PyTorch's x @ W.T with W of shape (out, in).
    w1 = jax.random.uniform(k1, (NUM_FEATURES, HIDDEN_FEATURES), jnp.float32,
                            -bound1, bound1)
    b1 = jax.random.uniform(k2, (HIDDEN_FEATURES,), jnp.float32, -bound1, bound1)
    w2 = jax.random.uniform(k3, (HIDDEN_FEATURES, NUM_CLASSES), jnp.float32,
                            -bound2, bound2)
    b2 = jax.random.uniform(k4, (NUM_CLASSES,), jnp.float32, -bound2, bound2)
    return w1, b1, w2, b2


if __name__ == "__main__":
    key = jax.random.PRNGKey(0)
    kx, kp = jax.random.split(key)

    batch = 2
    x = jax.random.normal(kx, (batch, NUM_FEATURES), jnp.float32)
    w1, b1, w2, b2 = _init_params(kp)

    # Padding / bias folding happens once, outside the forward hot path.
    w1_p, b1_p, w2_p = prepare_params(w1, b1, w2, b2)

    out = iris_model_forward(x, w1_p, b1_p, w2_p)
    out = jax.block_until_ready(out)

    # Pure-JAX reference for correctness.
    h_ref = jnp.maximum(x @ w1 + b1, 0.0)
    logits_ref = h_ref @ w2 + b2
    probs_ref = jax.nn.softmax(logits_ref, axis=1)

    assert out.shape == (batch, NUM_CLASSES)
    assert jnp.allclose(out, probs_ref, atol=1e-5, rtol=1e-5)
    assert jnp.allclose(jnp.sum(out, axis=1), jnp.ones((batch,)), atol=1e-5)

    # Sanity check of the multi-tile (2-step, padded-batch) grid path.
    x_big = jax.random.normal(kx, (1000, NUM_FEATURES), jnp.float32)
    out_big = jax.block_until_ready(
        iris_model_forward(x_big, w1_p, b1_p, w2_p))
    probs_big = jax.nn.softmax(jnp.maximum(x_big @ w1 + b1, 0.0) @ w2 + b2, axis=1)
    assert out_big.shape == (1000, NUM_CLASSES)
    assert jnp.allclose(out_big, probs_big, atol=1e-5, rtol=1e-5)

    print("KERNEL_OK")
</pallas_src>

<mosaic_0001>
module attributes {stable_mosaic.version = 11 : i64} {
  func.func @_mlp_softmax_kernel(%arg0: i32, %arg1: memref<8x4xf32, #tpu.memory_space<vmem>>, %arg2: memref<4x128xf32, #tpu.memory_space<vmem>>, %arg3: memref<1x128xf32, #tpu.memory_space<vmem>>, %arg4: memref<128x128xf32, #tpu.memory_space<vmem>>, %arg5: memref<8x8xf32, #tpu.memory_space<vmem>>) attributes {dimension_semantics = [#tpu.dimension_semantics<parallel>], iteration_bounds = array<i64: 1>, scalar_prefetch = 0 : i64, scratch_operands = 0 : i64, tpu.core_type = #tpu.core_type<tc>, window_params = [{transform_indices = @transform_0, window_bounds = array<i64: 8, 4>}, {pipeline_mode = #tpu.pipeline_mode<synchronous>, transform_indices = @transform_1, window_bounds = array<i64: 4, 128>}, {pipeline_mode = #tpu.pipeline_mode<synchronous>, transform_indices = @transform_2, window_bounds = array<i64: 1, 128>}, {pipeline_mode = #tpu.pipeline_mode<synchronous>, transform_indices = @transform_3, window_bounds = array<i64: 128, 128>}, {transform_indices = @transform_4, window_bounds = array<i64: 8, 8>}]} {
    %c0 = arith.constant 0 : index
    %c0_0 = arith.constant 0 : index
    %0 = vector.load %arg1[%c0, %c0_0] : memref<8x4xf32, #tpu.memory_space<vmem>>, vector<8x4xf32>
    %c0_1 = arith.constant 0 : index
    %c0_2 = arith.constant 0 : index
    %1 = vector.load %arg2[%c0_1, %c0_2] : memref<4x128xf32, #tpu.memory_space<vmem>>, vector<4x128xf32>
    %cst = arith.constant dense<0.000000e+00> : vector<8x128xf32>
    %2 = tpu.matmul %0, %1, %cst {dimension_numbers = #tpu.dot_dimension_numbers<[1], [0], [0], [1], [0, 0, 1, 1], [], []>} : vector<8x4xf32>, vector<4x128xf32>, vector<8x128xf32> -> vector<8x128xf32>
    %c0_3 = arith.constant 0 : index
    %c0_4 = arith.constant 0 : index
    %3 = vector.load %arg3[%c0_3, %c0_4] : memref<1x128xf32, #tpu.memory_space<vmem>>, vector<1x128xf32>
    %4 = vector.broadcast %3 : vector<1x128xf32> to vector<8x128xf32>
    %5 = arith.addf %2, %4 : vector<8x128xf32>
    %cst_5 = arith.constant 0.000000e+00 : f32
    %6 = vector.broadcast %cst_5 : f32 to vector<8x128xf32>
    %7 = arith.maximumf %5, %6 : vector<8x128xf32>
    %c0_6 = arith.constant 0 : index
    %c0_7 = arith.constant 0 : index
    %8 = vector.load %arg4[%c0_6, %c0_7] : memref<128x128xf32, #tpu.memory_space<vmem>>, vector<128x128xf32>
    %cst_8 = arith.constant dense<0.000000e+00> : vector<8x128xf32>
    %9 = tpu.matmul %7, %8, %cst_8 {dimension_numbers = #tpu.dot_dimension_numbers<[1], [0], [0], [1], [0, 0, 1, 1], [], []>} : vector<8x128xf32>, vector<128x128xf32>, vector<8x128xf32> -> vector<8x128xf32>
    %cst_9 = arith.constant dense<0xFF800000> : vector<8xf32>
    %10 = vector.multi_reduction <maximumf>, %9, %cst_9 [1] : vector<8x128xf32> to vector<8xf32>
    %11 = vector.shape_cast %10 : vector<8xf32> to vector<8x1xf32>
    %12 = vector.broadcast %11 : vector<8x1xf32> to vector<8x128xf32>
    %13 = arith.subf %9, %12 : vector<8x128xf32>
    %14 = math.exp %13 : vector<8x128xf32>
    %cst_10 = arith.constant dense<0.000000e+00> : vector<8xf32>
    %15 = vector.multi_reduction <add>, %14, %cst_10 [1] : vector<8x128xf32> to vector<8xf32>
    %16 = vector.shape_cast %15 : vector<8xf32> to vector<8x1xf32>
    %17 = tpu.reciprocal %16 : vector<8x1xf32> -> vector<8x1xf32>
    %18 = vector.broadcast %17 : vector<8x1xf32> to vector<8x128xf32>
    %19 = arith.mulf %14, %18 : vector<8x128xf32>
    %20 = vector.extract_strided_slice %19 {offsets = [0, 0], sizes = [8, 8], strides = [1, 1]} : vector<8x128xf32> to vector<8x8xf32>
    %c0_11 = arith.constant 0 : index
    %c0_12 = arith.constant 0 : index
    %21 = vector.load %arg5[%c0_11, %c0_12] : memref<8x8xf32, #tpu.memory_space<vmem>>, vector<8x8xf32>
    tpu.vector_store %arg5[%c0_11, %c0_12], %20 {strides = array<i32>} : memref<8x8xf32, #tpu.memory_space<vmem>>, vector<8x8xf32>,
    return
  }
  func.func @transform_0(%arg0: i32) -> (i32, i32) {
    %c0_i32 = arith.constant 0 : i32
    %c0_i32_0 = arith.constant 0 : i32
    return %arg0, %c0_i32 : i32, i32
  }
  func.func @transform_1(%arg0: i32) -> (i32, i32) {
    %c0_i32 = arith.constant 0 : i32
    %c0_i32_0 = arith.constant 0 : i32
    %c0_i32_1 = arith.constant 0 : i32
    return %c0_i32, %c0_i32_0 : i32, i32
  }
  func.func @transform_2(%arg0: i32) -> (i32, i32) {
    %c0_i32 = arith.constant 0 : i32
    %c0_i32_0 = arith.constant 0 : i32
    %c0_i32_1 = arith.constant 0 : i32
    return %c0_i32, %c0_i32_0 : i32, i32
  }
  func.func @transform_3(%arg0: i32) -> (i32, i32) {
    %c0_i32 = arith.constant 0 : i32
    %c0_i32_0 = arith.constant 0 : i32
    %c0_i32_1 = arith.constant 0 : i32
    return %c0_i32, %c0_i32_0 : i32, i32
  }
  func.func @transform_4(%arg0: i32) -> (i32, i32) {
    %c0_i32 = arith.constant 0 : i32
    %c0_i32_0 = arith.constant 0 : i32
    return %arg0, %c0_i32 : i32, i32
  }
}

</mosaic_0001>

<llo_original>
// kernel: iris_model_forward.1
$region0: #{iris_model_forward.1}
  #allocation0 [shape = 'u32[]', space=smem, size = 0x4, offset = 0x4, fixed_abs, tag = 'smem constant byte address 0x4 - core index']
  #allocation1 [shape = 'u32[144,128]{1,0:T(1,128)}', space=vmem, size = 0x12000, scoped, tag = 'internal scratch']
  %s0 = inlined_call_operand.vmem [shape: f32[8,4], index: 0, kind: input, shape index: {}]
  %s1 = inlined_call_operand.vmem [shape: f32[4,128], index: 1, kind: input, shape index: {}]
  %s2 = inlined_call_operand.vmem [shape: f32[1,128], index: 2, kind: input, shape index: {}]
  %s3 = inlined_call_operand.hbm [shape: f32[128,128], index: 3, kind: input, shape index: {}]
  %s4 = inlined_call_operand.vmem [shape: f32[8,8], index: 4, kind: output, shape index: {}]
  %s5 = sld [smem:[#allocation0]]
  $region30: #{iris_model_forward.1} parent=0
    _
  %s7 = ssub.s32 1, %s5
  %s8 = scalar_select 0, %s7, %s5
  $region1: #{iris_model_forward.1} parent=0
    #allocation2 [shape = 'u8[65536]{0}', space=vmem, size = 0x10000, scoped, tag = 'input window, operand 3, single buffered']
    #allocation3 [shape = 's32[1]{0}', space=sflag, size = 0x4, scoped, tag = 'scoped memory for iris_model_forward.1']
    %9 = vsyncpa [#allocation3], 0
    // Predicated region
    $region2: #{iris_model_forward.1} parent=1 // pred_check
      _
    $region3: #{iris_model_forward.1} parent=1 // pred_check_branch
      %11 = sbr.rel (0) target = $region5
    $region4: #{iris_model_forward.1} parent=1 // pred_region
      _
    $region5: #{iris_model_forward.1} parent=1 // pred_fallthru
      _
    // Predicated region
    $region6: #{iris_model_forward.1} parent=1 // pred_check
      _
    $region7: #{iris_model_forward.1} parent=1 // pred_check_branch
      %13 = sbr.rel (0) target = $region9
    $region8: #{iris_model_forward.1} parent=1 // pred_region
      _
    $region9: #{iris_model_forward.1} parent=1 // pred_fallthru
      _
    // Predicated region
    $region10: #{iris_model_forward.1} parent=1 // pred_check
      _
    $region11: #{iris_model_forward.1} parent=1 // pred_check_branch
      %15 = sbr.rel (0) target = $region13
    $region12: #{iris_model_forward.1} parent=1 // pred_region
      _
    $region13: #{iris_model_forward.1} parent=1 // pred_fallthru
      _
    // Predicated region
    $region14: #{iris_model_forward.1} parent=1 // pred_check
      _
    $region15: #{iris_model_forward.1} parent=1 // pred_check_branch
      %17 = sbr.rel (0) target = $region17
    $region16: #{iris_model_forward.1} parent=1 // pred_region
      %s19 = ssub.s32 2048, 2048
      %20 = vsyncadd [#allocation3], %s19
      %s21 = sshll.u32 [#allocation2], 4
      %s22 = int_to_ptr.vmem [resolvable:$true] %s21
      %27 = dma.hbm_to_vmem [thread:$0]  %s3, 2048, %s22, [#allocation3], 128, 128, 8
    $region17: #{iris_model_forward.1} parent=1 // pred_fallthru
      _
    // Predicated region
    $region18: #{iris_model_forward.1} parent=1 // pred_check
      _
    $region19: #{iris_model_forward.1} parent=1 // pred_check_branch
      %29 = sbr.rel (0) target = $region21
    $region20: #{iris_model_forward.1} parent=1 // pred_region
      %30 = dma.done [#allocation3], 2048
    $region21: #{iris_model_forward.1} parent=1 // pred_fallthru
      _
    %v31 = vld [vmem:[%s0] sm:$0xff]
    %v32 = vld [vmem:[%s1] sm:$0xf]
    %v33 = vld [vmem:[%s2] sm:$0x1]
    %v35 = vlaneseq
    %v36 = vshrl.u32 %v35, 7
    %v37 = vsub.s32 0, %v36
    %v38 = vrot.slane %v33, %v37
    %vm40 = vcmask 31744
    %v42 = vsel %vm40, %v31, 0
    %vm44 = vcmask 1043456
    %v46 = vsel %vm44, %v32, 0
    %48 = vmatprep.subr.mxu0 0.0
    %49 = vmatpush1.msra.mxu0 0.0
    %50 = vmatprep.subr.mxu0 0.0
    %51 = vmatpush1.msra.mxu0 0.0
    %52 = vmatprep.subr.mxu0 0.0
    %53 = vmatpush1.msra.mxu0 0.0
    %54 = vmatprep.subr.mxu0 0.0
    %55 = vmatpush1.msra.mxu0 0.0
    %56 = vmatprep.subr.mxu0 0.0
    %57 = vmatpush1.msra.mxu0 0.0
    %58 = vmatprep.subr.mxu0 0.0
    %59 = vmatpush1.msra.mxu0 0.0
    %60 = vmatprep.subr.mxu0 0.0
    %61 = vmatpush1.msra.mxu0 0.0
    %62 = vmatprep.subr.mxu0 0.0
    %63 = vmatpush1.msra.mxu0 0.0
    %64 = vmatprep.subr.mxu0 0.0
    %65 = vmatpush1.msra.mxu0 0.0
    %66 = vmatprep.subr.mxu0 0.0
    %67 = vmatpush1.msra.mxu0 0.0
    %68 = vmatprep.subr.mxu0 0.0
    %69 = vmatpush1.msra.mxu0 0.0
    %70 = vmatprep.subr.mxu0 0.0
    %71 = vmatpush1.msra.mxu0 0.0
    %72 = vmatprep.subr.mxu0 0.0
    %73 = vmatpush1.msra.mxu0 0.0
    %74 = vmatprep.subr.mxu0 0.0
    %75 = vmatpush1.msra.mxu0 0.0
    %76 = vmatprep.subr.mxu0 0.0
    %77 = vmatpush1.msra.mxu0 0.0
    %78 = vmatprep.subr.mxu0 0.0
    %79 = vmatpush1.msra.mxu0 %v46
    %80 = vmatprep.subr.mxu0 0.0
    %81 = vmatpush2.msra.mxu0 0.0
    %82 = vmatprep.subr.mxu0 0.0
    %83 = vmatpush2.msra.mxu0 0.0
    %84 = vmatprep.subr.mxu0 0.0
    %85 = vmatpush2.msra.mxu0 0.0
    %86 = vmatprep.subr.mxu0 0.0
    %87 = vmatpush2.msra.mxu0 0.0
    %88 = vmatprep.subr.mxu0 0.0
    %89 = vmatpush2.msra.mxu0 0.0
    %90 = vmatprep.subr.mxu0 0.0
    %91 = vmatpush2.msra.mxu0 0.0
    %92 = vmatprep.subr.mxu0 0.0
    %93 = vmatpush2.msra.mxu0 0.0
    %94 = vmatprep.subr.mxu0 0.0
    %95 = vmatpush2.msra.mxu0 0.0
    %96 = vmatprep.subr.mxu0 0.0
    %97 = vmatpush2.msra.mxu0 0.0
    %98 = vmatprep.subr.mxu0 0.0
    %99 = vmatpush2.msra.mxu0 0.0
    %100 = vmatprep.subr.mxu0 0.0
    %101 = vmatpush2.msra.mxu0 0.0
    %102 = vmatprep.subr.mxu0 0.0
    %103 = vmatpush2.msra.mxu0 0.0
    %104 = vmatprep.subr.mxu0 0.0
    %105 = vmatpush2.msra.mxu0 0.0
    %106 = vmatprep.subr.mxu0 0.0
    %107 = vmatpush2.msra.mxu0 0.0
    %108 = vmatprep.subr.mxu0 0.0
    %109 = vmatpush2.msra.mxu0 0.0
    %110 = vmatprep.subr.mxu0 0.0
    %111 = vmatpush2.msra.mxu0 0.0
    %112 = vmatprep.mubr.f32.mxu0 0.0
    %113 = vmatmul.mubr.f32.gmra.mxu0 %v42
    %v114 = vpop.f32.mrf.mxu0
    %v115 = vadd.f32 %v38, %v114
    %v116 = vpop.f32.mrf.mxu0
    %117 = vdwg.mxu0
    %v118 = vmax.f32 %v115, 0.0
    %v119 = vld [vmem:[#allocation2] sm:$0xff]
    %v120 = vld [vmem:[#allocation2 + $0x8] sm:$0xff]
    %v121 = vld [vmem:[#allocation2 + $0x10] sm:$0xff]
    %v122 = vld [vmem:[#allocation2 + $0x18] sm:$0xff]
    %v123 = vld [vmem:[#allocation2 + $0x20] sm:$0xff]
    %v124 = vld [vmem:[#allocation2 + $0x28] sm:$0xff]
    %v125 = vld [vmem:[#allocation2 + $0x30] sm:$0xff]
    %v126 = vld [vmem:[#allocation2 + $0x38] sm:$0xff]
    %v127 = vld [vmem:[#allocation2 + $0x40] sm:$0xff]
    %v128 = vld [vmem:[#allocation2 + $0x48] sm:$0xff]
    %v129 = vld [vmem:[#allocation2 + $0x50] sm:$0xff]
    %v130 = vld [vmem:[#allocation2 + $0x58] sm:$0xff]
    %v131 = vld [vmem:[#allocation2 + $0x60] sm:$0xff]
    %v132 = vld [vmem:[#allocation2 + $0x68] sm:$0xff]
    %v133 = vld [vmem:[#allocation2 + $0x70] sm:$0xff]
    %v134 = vld [vmem:[#allocation2 + $0x78] sm:$0xff]
    %135 = vmatprep.subr.mxu0 0.0
    %136 = vmatpush1.msra.mxu0 %v134
    %137 = vmatprep.subr.mxu0 0.0
    %138 = vmatpush1.msra.mxu0 %v133
    %139 = vmatprep.subr.mxu0 0.0
    %140 = vmatpush1.msra.mxu0 %v132
    %141 = vmatprep.subr.mxu0 0.0
    %142 = vmatpush1.msra.mxu0 %v131
    %143 = vmatprep.subr.mxu0 0.0
    %144 = vmatpush1.msra.mxu0 %v130
    %145 = vmatprep.subr.mxu0 0.0
    %146 = vmatpush1.msra.mxu0 %v129
    %147 = vmatprep.subr.mxu0 0.0
    %148 = vmatpush1.msra.mxu0 %v128
    %149 = vmatprep.subr.mxu0 0.0
    %150 = vmatpush1.msra.mxu0 %v127
    %151 = vmatprep.subr.mxu0 0.0
    %152 = vmatpush1.msra.mxu0 %v126
    %153 = vmatprep.subr.mxu0 0.0
    %154 = vmatpush1.msra.mxu0 %v125
    %155 = vmatprep.subr.mxu0 0.0
    %156 = vmatpush1.msra.mxu0 %v124
    %157 = vmatprep.subr.mxu0 0.0
    %158 = vmatpush1.msra.mxu0 %v123
    %159 = vmatprep.subr.mxu0 0.0
    %160 = vmatpush1.msra.mxu0 %v122
    %161 = vmatprep.subr.mxu0 0.0
    %162 = vmatpush1.msra.mxu0 %v121
    %163 = vmatprep.subr.mxu0 0.0
    %164 = vmatpush1.msra.mxu0 %v120
    %165 = vmatprep.subr.mxu0 0.0
    %166 = vmatpush1.msra.mxu0 %v119
    %167 = vmatprep.subr.mxu0 0.0
    %168 = vmatpush2.msra.mxu0 0.0
    %169 = vmatprep.subr.mxu0 0.0
    %170 = vmatpush2.msra.mxu0 0.0
    %171 = vmatprep.subr.mxu0 0.0
    %172 = vmatpush2.msra.mxu0 0.0
    %173 = vmatprep.subr.mxu0 0.0
    %174 = vmatpush2.msra.mxu0 0.0
    %175 = vmatprep.subr.mxu0 0.0
    %176 = vmatpush2.msra.mxu0 0.0
    %177 = vmatprep.subr.mxu0 0.0
    %178 = vmatpush2.msra.mxu0 0.0
    %179 = vmatprep.subr.mxu0 0.0
    %180 = vmatpush2.msra.mxu0 0.0
    %181 = vmatprep.subr.mxu0 0.0
    %182 = vmatpush2.msra.mxu0 0.0
    %183 = vmatprep.subr.mxu0 0.0
    %184 = vmatpush2.msra.mxu0 0.0
    %185 = vmatprep.subr.mxu0 0.0
    %186 = vmatpush2.msra.mxu0 0.0
    %187 = vmatprep.subr.mxu0 0.0
    %188 = vmatpush2.msra.mxu0 0.0
    %189 = vmatprep.subr.mxu0 0.0
    %190 = vmatpush2.msra.mxu0 0.0
    %191 = vmatprep.subr.mxu0 0.0
    %192 = vmatpush2.msra.mxu0 0.0
    %193 = vmatprep.subr.mxu0 0.0
    %194 = vmatpush2.msra.mxu0 0.0
    %195 = vmatprep.subr.mxu0 0.0
    %196 = vmatpush2.msra.mxu0 0.0
    %197 = vmatprep.subr.mxu0 0.0
    %198 = vmatpush2.msra.mxu0 0.0
    %199 = vmatprep.mubr.f32.mxu0 0.0
    %200 = vmatmul.mubr.f32.gmra.mxu0 %v118
    %v201 = vpop.f32.mrf.mxu0
    %v202 = vadd.f32 0.0, %v201
    %v203 = vpop.f32.mrf.mxu0
    %204 = vdwg.mxu0
    %205 = vmax.xlane.f32.xlu0 %v202
    %v206 = vpop.xlane.xlu0 %205
    %v207 = vsub.f32 %v202, %v206
    %v208 = vmul.f32 %v207, 1.442695
    %v209 = vpow.pop %v208
    %210 = vadd.xlane.f32.xlu0 %v209
    %v211 = vpop.xlane.xlu0 %210
    %v212 = vrcp.pop %v211
    %v213 = vmul.f32 %v209, %v212
    %vm214 = vcmask 64512
    %215 = vst.msk [vmem:[%s4] sm:$0xff] %vm214, %v213
    // Predicated region
    $region22: #{iris_model_forward.1} parent=1 // pred_check
      _
    $region23: #{iris_model_forward.1} parent=1 // pred_check_branch
      %217 = sbr.rel (0) target = $region25
    $region24: #{iris_model_forward.1} parent=1 // pred_region
      _
    $region25: #{iris_model_forward.1} parent=1 // pred_fallthru
      _
    // Predicated region
    $region26: #{iris_model_forward.1} parent=1 // pred_check
      _
    $region27: #{iris_model_forward.1} parent=1 // pred_check_branch
      %219 = sbr.rel (0) target = $region29
    $region28: #{iris_model_forward.1} parent=1 // pred_region
      _
    $region29: #{iris_model_forward.1} parent=1 // pred_fallthru
      _
    %220 = vsyncpa [#allocation3], 1

</llo_original>
